<compile_context>
chip_gen: v7x
topology: tpu7x:2x2x1
jax: 0.10.0
libtpu: 0.0.40
codegen_flags: <defaults>
</compile_context>

<pallas_src>
import jax
import jax.numpy as jnp
from jax.experimental import pallas as pl
from jax.experimental.pallas import tpu as pltpu

LANE = 128
SUBLANE = 8


def _round_up(x, m):
    return ((x + m - 1) // m) * m


def _apply_activation(x, activation):
    if activation == "relu":
        return jnp.maximum(x, 0.0)
    if activation == "leakyrelu":
        return jnp.where(x > 0, x, 0.2 * x)
    if activation == "I":          # LeakyReLU(negative_slope=1) == identity
        return x
    if activation == "elu":
        return jnp.where(x > 0, x, jnp.expm1(x))
    if activation == "tanh":
        return jnp.tanh(x)
    raise ValueError(f"unsupported activation: {activation}")


def _make_stack_kernel(kernel_size, activation):
    """Fused multi-layer SplineConv kernel. Grid axis 0 = layer index."""

    def kern(adj_ref, x_ref, w_ref, b_ref, out_ref):
        layer = pl.program_id(0)

        # Layer 0: seed the resident feature buffer (the output block, which is
        # revisited across the whole layer axis) with the input features.
        @pl.when(layer == 0)
        def _():
            out_ref[...] = x_ref[...]

        x = out_ref[...]                                        # (N_p, C_p) bf16

        # Spline-weighted neighbor aggregation: agg_k = A[k] @ X  (MXU, f32 acc).
        parts = [x]
        for k in range(kernel_size):
            agg = jnp.dot(adj_ref[k], x, preferred_element_type=jnp.float32)
            parts.append(agg.astype(jnp.bfloat16))

        # Single wide output projection:
        #   [x | agg_0 | ... | agg_{K-1}]  @  [Wroot; W_0; ...; W_{K-1}]
        cat = jnp.concatenate(parts, axis=-1)                   # (N_p, (K+1)*C_p)
        acc = jnp.dot(cat, w_ref[0], preferred_element_type=jnp.float32)
        acc = acc + b_ref[0]                                    # (1, C_p) broadcast

        # dropout(training=False) == identity
        out_ref[...] = _apply_activation(acc, activation).astype(out_ref.dtype)

    return kern


def splineconv_stack(x_pad, adj_pad, wcat, bias, activation, n_nodes, out_channels):
    """Run the whole SplineConv stack in one pallas_call."""
    kernel_size, n_p, _ = adj_pad.shape
    num_layers, kc, c_p = wcat.shape

    # VMEM budget: resident adj + x + out, double-buffered per-layer weights,
    # plus temporaries; cap well below v7x's 64 MiB physical VMEM.
    resident = (adj_pad.size * 2 + x_pad.size * 2 + n_p * c_p * 2
                + 2 * (kc * c_p * 2 + c_p * 4)
                + n_p * (kernel_size + 2) * c_p * 4)
    vmem_limit = int(min(max(8 << 20, 4 * resident), 48 << 20))

    kern = _make_stack_kernel(kernel_size, activation)

    out = pl.pallas_call(
        kern,
        out_shape=jax.ShapeDtypeStruct((n_p, c_p), jnp.bfloat16),
        grid_spec=pltpu.PrefetchScalarGridSpec(
            num_scalar_prefetch=0,
            grid=(num_layers,),
            in_specs=[
                # Adjacency + input features: constant block index -> fetched
                # once, resident in VMEM for every layer.
                pl.BlockSpec((kernel_size, n_p, n_p), lambda l: (0, 0, 0)),
                pl.BlockSpec((n_p, c_p), lambda l: (0, 0)),
                # Per-layer stacked weights / bias: streamed along the layer
                # axis (auto double-buffered by the Pallas pipeline).
                pl.BlockSpec((1, kc, c_p), lambda l: (l, 0, 0)),
                pl.BlockSpec((1, 1, c_p), lambda l: (l, 0, 0)),
            ],
            out_specs=pl.BlockSpec((n_p, c_p), lambda l: (0, 0)),
        ),
        compiler_params=pltpu.CompilerParams(
            # Layer axis carries a sequential dependency through the resident
            # output block -> must be "arbitrary".
            dimension_semantics=("arbitrary",),
            vmem_limit_bytes=vmem_limit,
        ),
    )(adj_pad, x_pad, wcat, bias)

    return out[:n_nodes, :out_channels].astype(jnp.float32)


def build_spline_adjacency(edge_index, edge_attr, num_nodes, kernel_size):
    """Densify degree-1 open B-spline basis (dim=1) + 'mean' aggregation into (K, N, N)."""
    u = jnp.clip(edge_attr[:, 0].astype(jnp.float32), 0.0, 1.0)
    v = u * (kernel_size - 1)
    k0 = jnp.clip(jnp.floor(v).astype(jnp.int32), 0, kernel_size - 1)
    frac = v - k0.astype(jnp.float32)
    k1 = jnp.clip(k0 + 1, 0, kernel_size - 1)
    b0, b1 = 1.0 - frac, frac

    src, dst = edge_index[0], edge_index[1]
    adj = jnp.zeros((kernel_size, num_nodes, num_nodes), jnp.float32)
    adj = adj.at[k0, dst, src].add(b0)
    adj = adj.at[k1, dst, src].add(b1)

    deg = jnp.zeros((num_nodes,), jnp.float32).at[dst].add(1.0)
    inv_deg = jnp.where(deg > 0, 1.0 / deg, 0.0)
    return adj * inv_deg[None, :, None]


def layer_dims(in_channels, out_channels, num_layers, n_units):
    """Replicates build_multi_layers channel plumbing (SplineConv branch)."""
    if num_layers == 1:
        return [(in_channels, out_channels)]
    dims = [(in_channels, n_units[0])]
    for i in range(1, num_layers - 1):
        if i == num_layers - 2:
            dims.append((n_units[i - 1], out_channels))
        else:
            dims.append((n_units[i - 1], n_units[i]))
    return dims


def init_params(key, dims, kernel_size):
    params = []
    for (cin, cout) in dims:
        key, kw, kr, kb = jax.random.split(key, 4)
        scale = 1.0 / jnp.sqrt(jnp.float32(cin * kernel_size))
        params.append(
            dict(
                weight=jax.random.normal(kw, (kernel_size, cin, cout), jnp.float32) * scale,
                root=jax.random.normal(kr, (cin, cout), jnp.float32) / jnp.sqrt(jnp.float32(cin)),
                bias=jax.random.normal(kb, (cout,), jnp.float32) * 0.01,
            )
        )
    return params


def prepare_inputs(params, x, adj, kernel_size):
    """One-time packing: pad / stack / cast hoisted out of the per-forward path."""
    n_nodes = x.shape[0]
    c_max = max(max(p["root"].shape[0], p["root"].shape[1]) for p in params)
    c_p = _round_up(max(c_max, x.shape[1], 1), LANE)
    n_p = _round_up(n_nodes, SUBLANE)

    wcats, biases = [], []
    for layer in params:
        wr, w, b = layer["root"], layer["weight"], layer["bias"]
        cin, cout = wr.shape
        segs = [wr] + [w[k] for k in range(kernel_size)]
        segs = [jnp.pad(s, ((0, c_p - cin), (0, c_p - cout))) for s in segs]
        wcats.append(jnp.concatenate(segs, axis=0))            # ((K+1)*C_p, C_p)
        biases.append(jnp.pad(b, (0, c_p - cout)).reshape(1, c_p))

    wcat = jnp.stack(wcats).astype(jnp.bfloat16)               # (L, (K+1)*C_p, C_p)
    bias = jnp.stack(biases).astype(jnp.float32)               # (L, 1, C_p)

    x_pad = jnp.pad(
        x.astype(jnp.float32),
        ((0, n_p - n_nodes), (0, c_p - x.shape[1])),
    ).astype(jnp.bfloat16)                                     # (N_p, C_p)
    adj_pad = jnp.pad(
        adj, ((0, 0), (0, n_p - n_nodes), (0, n_p - n_nodes))
    ).astype(jnp.bfloat16)                                     # (K, N_p, N_p)
    return x_pad, adj_pad, wcat, bias


if __name__ == "__main__":
    # Model config (kwargs of SplineconvModel)
    in_channels, out_channels = 4, 8
    num_layers, n_units = 3, [32, 32]
    kernel_size = 3
    activation = "relu"
    dropout = 0.1            # inactive in eval (inference) mode

    # Graph: N nodes, E directed edges, 1-D edge pseudo-coordinates in [0, 1]
    N, E = 16, 48
    key = jax.random.PRNGKey(0)
    kx, ke, ka, kp = jax.random.split(key, 4)

    x = jax.random.normal(kx, (N, in_channels), jnp.float32)
    edge_index = jax.random.randint(ke, (2, E), 0, N, dtype=jnp.int32)
    edge_attr = jax.random.uniform(ka, (E, 1), jnp.float32)

    adj = build_spline_adjacency(edge_index, edge_attr, N, kernel_size)
    dims = layer_dims(in_channels, out_channels, num_layers, n_units)
    params = init_params(kp, dims, kernel_size)

    x_pad, adj_pad, wcat, bias = prepare_inputs(params, x, adj, kernel_size)
    out = splineconv_stack(x_pad, adj_pad, wcat, bias, activation, N, out_channels)
    out = jax.block_until_ready(out)
    assert out.shape == (N, out_channels), out.shape
    print("KERNEL_OK")
</pallas_src>

<mosaic_0001>
module attributes {stable_mosaic.version = 11 : i64} {
  func.func @kern(%arg0: i32, %arg1: memref<3x16x16xbf16, #tpu.memory_space<vmem>>, %arg2: memref<16x128xbf16, #tpu.memory_space<vmem>>, %arg3: memref<1x512x128xbf16, #tpu.memory_space<vmem>>, %arg4: memref<1x1x128xf32, #tpu.memory_space<vmem>>, %arg5: memref<16x128xbf16, #tpu.memory_space<vmem>>) attributes {dimension_semantics = [#tpu.dimension_semantics<arbitrary>], iteration_bounds = array<i64: 2>, scalar_prefetch = 0 : i64, scratch_operands = 0 : i64, tpu.core_type = #tpu.core_type<tc>, window_params = [{pipeline_mode = #tpu.pipeline_mode<synchronous>, transform_indices = @transform_0, window_bounds = array<i64: 3, 16, 16>}, {pipeline_mode = #tpu.pipeline_mode<synchronous>, transform_indices = @transform_1, window_bounds = array<i64: 16, 128>}, {transform_indices = @transform_2, window_bounds = array<i64: 1, 512, 128>}, {transform_indices = @transform_3, window_bounds = array<i64: 1, 1, 128>}, {pipeline_mode = #tpu.pipeline_mode<synchronous>, transform_indices = @transform_4, window_bounds = array<i64: 16, 128>}]} {
    %c0_i32 = arith.constant 0 : i32
    %0 = arith.cmpi eq, %arg0, %c0_i32 : i32
    %1 = arith.extui %0 : i1 to i32
    %c0_i32_0 = arith.constant 0 : i32
    %2 = arith.cmpi ne, %1, %c0_i32_0 : i32
    scf.if %2 {
      %c0_21 = arith.constant 0 : index
      %c0_22 = arith.constant 0 : index
      %28 = vector.load %arg2[%c0_21, %c0_22] : memref<16x128xbf16, #tpu.memory_space<vmem>>, vector<16x128xbf16>
      %c0_23 = arith.constant 0 : index
      %c0_24 = arith.constant 0 : index
      %29 = vector.load %arg5[%c0_23, %c0_24] : memref<16x128xbf16, #tpu.memory_space<vmem>>, vector<16x128xbf16>
      tpu.vector_store %arg5[%c0_23, %c0_24], %28 {strides = array<i32>} : memref<16x128xbf16, #tpu.memory_space<vmem>>, vector<16x128xbf16>,
    } else {
    }
    %c0 = arith.constant 0 : index
    %c0_1 = arith.constant 0 : index
    %3 = vector.load %arg5[%c0, %c0_1] : memref<16x128xbf16, #tpu.memory_space<vmem>>, vector<16x128xbf16>
    %c0_2 = arith.constant 0 : index
    %c0_3 = arith.constant 0 : index
    %c0_4 = arith.constant 0 : index
    %4 = vector.load %arg1[%c0_2, %c0_3, %c0_4] : memref<3x16x16xbf16, #tpu.memory_space<vmem>>, vector<1x16x16xbf16>
    %5 = vector.shape_cast %4 : vector<1x16x16xbf16> to vector<16x16xbf16>
    %cst = arith.constant dense<0.000000e+00> : vector<16x128xf32>
    %6 = tpu.matmul %5, %3, %cst {dimension_numbers = #tpu.dot_dimension_numbers<[1], [0], [0], [1], [0, 0, 1, 1], [], []>} : vector<16x16xbf16>, vector<16x128xbf16>, vector<16x128xf32> -> vector<16x128xf32>
    %7 = arith.truncf %6 : vector<16x128xf32> to vector<16x128xbf16>
    %c1 = arith.constant 1 : index
    %c0_5 = arith.constant 0 : index
    %c0_6 = arith.constant 0 : index
    %8 = vector.load %arg1[%c1, %c0_5, %c0_6] : memref<3x16x16xbf16, #tpu.memory_space<vmem>>, vector<1x16x16xbf16>
    %9 = vector.shape_cast %8 : vector<1x16x16xbf16> to vector<16x16xbf16>
    %cst_7 = arith.constant dense<0.000000e+00> : vector<16x128xf32>
    %10 = tpu.matmul %9, %3, %cst_7 {dimension_numbers = #tpu.dot_dimension_numbers<[1], [0], [0], [1], [0, 0, 1, 1], [], []>} : vector<16x16xbf16>, vector<16x128xbf16>, vector<16x128xf32> -> vector<16x128xf32>
    %11 = arith.truncf %10 : vector<16x128xf32> to vector<16x128xbf16>
    %c2 = arith.constant 2 : index
    %c0_8 = arith.constant 0 : index
    %c0_9 = arith.constant 0 : index
    %12 = vector.load %arg1[%c2, %c0_8, %c0_9] : memref<3x16x16xbf16, #tpu.memory_space<vmem>>, vector<1x16x16xbf16>
    %13 = vector.shape_cast %12 : vector<1x16x16xbf16> to vector<16x16xbf16>
    %cst_10 = arith.constant dense<0.000000e+00> : vector<16x128xf32>
    %14 = tpu.matmul %13, %3, %cst_10 {dimension_numbers = #tpu.dot_dimension_numbers<[1], [0], [0], [1], [0, 0, 1, 1], [], []>} : vector<16x16xbf16>, vector<16x128xbf16>, vector<16x128xf32> -> vector<16x128xf32>
    %15 = arith.truncf %14 : vector<16x128xf32> to vector<16x128xbf16>
    %16 = tpu.concatenate %3, %7, %11, %15 in 1 : vector<16x128xbf16>, vector<16x128xbf16>, vector<16x128xbf16>, vector<16x128xbf16> -> vector<16x512xbf16>
    %c0_11 = arith.constant 0 : index
    %c0_12 = arith.constant 0 : index
    %c0_13 = arith.constant 0 : index
    %17 = vector.load %arg3[%c0_11, %c0_12, %c0_13] : memref<1x512x128xbf16, #tpu.memory_space<vmem>>, vector<1x512x128xbf16>
    %18 = vector.shape_cast %17 : vector<1x512x128xbf16> to vector<512x128xbf16>
    %cst_14 = arith.constant dense<0.000000e+00> : vector<16x128xf32>
    %19 = tpu.matmul %16, %18, %cst_14 {dimension_numbers = #tpu.dot_dimension_numbers<[1], [0], [0], [1], [0, 0, 1, 1], [], []>} : vector<16x512xbf16>, vector<512x128xbf16>, vector<16x128xf32> -> vector<16x128xf32>
    %c0_15 = arith.constant 0 : index
    %c0_16 = arith.constant 0 : index
    %c0_17 = arith.constant 0 : index
    %20 = vector.load %arg4[%c0_15, %c0_16, %c0_17] : memref<1x1x128xf32, #tpu.memory_space<vmem>>, vector<1x1x128xf32>
    %21 = vector.shape_cast %20 : vector<1x1x128xf32> to vector<1x128xf32>
    %22 = vector.broadcast %21 : vector<1x128xf32> to vector<16x128xf32>
    %23 = arith.addf %19, %22 : vector<16x128xf32>
    %cst_18 = arith.constant 0.000000e+00 : f32
    %24 = vector.broadcast %cst_18 : f32 to vector<16x128xf32>
    %25 = arith.maximumf %23, %24 : vector<16x128xf32>
    %26 = arith.truncf %25 : vector<16x128xf32> to vector<16x128xbf16>
    %c0_19 = arith.constant 0 : index
    %c0_20 = arith.constant 0 : index
    %27 = vector.load %arg5[%c0_19, %c0_20] : memref<16x128xbf16, #tpu.memory_space<vmem>>, vector<16x128xbf16>
    tpu.vector_store %arg5[%c0_19, %c0_20], %26 {strides = array<i32>} : memref<16x128xbf16, #tpu.memory_space<vmem>>, vector<16x128xbf16>,
    return
  }
  func.func @transform_0(%arg0: i32) -> (i32, i32, i32) {
    %c0_i32 = arith.constant 0 : i32
    %c0_i32_0 = arith.constant 0 : i32
    %c0_i32_1 = arith.constant 0 : i32
    %c0_i32_2 = arith.constant 0 : i32
    return %c0_i32, %c0_i32_0, %c0_i32_1 : i32, i32, i32
  }
  func.func @transform_1(%arg0: i32) -> (i32, i32) {
    %c0_i32 = arith.constant 0 : i32
    %c0_i32_0 = arith.constant 0 : i32
    %c0_i32_1 = arith.constant 0 : i32
    return %c0_i32, %c0_i32_0 : i32, i32
  }
  func.func @transform_2(%arg0: i32) -> (i32, i32, i32) {
    %c0_i32 = arith.constant 0 : i32
    %c0_i32_0 = arith.constant 0 : i32
    %c0_i32_1 = arith.constant 0 : i32
    return %arg0, %c0_i32, %c0_i32_0 : i32, i32, i32
  }
  func.func @transform_3(%arg0: i32) -> (i32, i32, i32) {
    %c0_i32 = arith.constant 0 : i32
    %c0_i32_0 = arith.constant 0 : i32
    %c0_i32_1 = arith.constant 0 : i32
    return %arg0, %c0_i32, %c0_i32_0 : i32, i32, i32
  }
  func.func @transform_4(%arg0: i32) -> (i32, i32) {
    %c0_i32 = arith.constant 0 : i32
    %c0_i32_0 = arith.constant 0 : i32
    %c0_i32_1 = arith.constant 0 : i32
    return %c0_i32, %c0_i32_0 : i32, i32
  }
}

</mosaic_0001>

<llo_original>
// kernel: tpu_custom_call.1
$region0: #{tpu_custom_call.1}
  #allocation0 [shape = 'u32[]', space=smem, size = 0x4, offset = 0x4, fixed_abs, tag = 'smem constant byte address 0x4 - core index']
  #allocation1 [shape = 'u32[144,128]{1,0:T(1,128)}', space=vmem, size = 0x12000, scoped, tag = 'internal scratch']
  %s0 = inlined_call_operand.hbm [shape: bf16[3,16,16], index: 0, kind: input, shape index: {}]
  %s1 = inlined_call_operand.hbm [shape: bf16[16,128], index: 1, kind: input, shape index: {}]
  %s2 = inlined_call_operand.hbm [shape: bf16[2,512,128], index: 2, kind: input, shape index: {}]
  %s3 = inlined_call_operand.vmem [shape: f32[2,1,128], index: 3, kind: input, shape index: {}]
  %s4 = inlined_call_operand.hbm [shape: bf16[16,128], index: 4, kind: output, shape index: {}]
  %s5 = sld [smem:[#allocation0]]
  $region65: #{tpu_custom_call.1} parent=0
    _
  %s7 = ssub.s32 1, %s5
  %s8 = scalar_select 0, %s7, %s5
  $region1: #{tpu_custom_call.1} parent=0
    #allocation2 [shape = 'u8[12288]{0}', space=vmem, size = 0x3000, scoped, tag = 'input window, operand 0, single buffered']
    #allocation3 [shape = 's32[2]{0}', space=sflag, size = 0x8, scoped, tag = 'scoped memory for tpu_custom_call.1']
    #allocation4 [shape = 's32[2]{0}', space=sflag, size = 0x8, scoped, tag = 'scoped memory for tpu_custom_call.1']
    #allocation5 [shape = 'u8[4096]{0}', space=vmem, size = 0x1000, scoped, tag = 'input window, operand 1, single buffered']
    #allocation6 [shape = 's32[1]{0}', space=sflag, size = 0x4, scoped, tag = 'scoped memory for tpu_custom_call.1']
    #allocation7 [shape = 'u8[262144]{0}', space=vmem, size = 0x40000, scoped, tag = 'input window, operand 2']
    #allocation8 [shape = 'u8[4096]{0}', space=vmem, size = 0x1000, scoped, tag = 'output window, operand 0, single buffered']
    %9 = vsyncpa [#allocation3], 0
    %10 = vsyncpa [#allocation6], 0
    %11 = vsyncpa [#allocation4], 0
    loop: start=0, step=1, limit=4
    $region2: #{tpu_custom_call.1} parent=1 // loop_pre_header
      _
    $region3: #{tpu_custom_call.1} parent=1 // loop_header
      %s13 = sphi 0, %s17
      %p14 = scmp.ge.s32.totalorder %s13, 4
      %s21 = sphi 0, %s21
      %s23 = sphi 0, %s21
      %s24 = sphi 0, %s23
      %s38 = sphi 0, %s24
      %s42 = sphi 0, %s42
      %s44 = sphi 0, %s42
      %s45 = sphi 0, %s44
      %s59 = sphi 0, %s45
      %s65 = sphi 0, %s67
      %s68 = sphi 0, %s65
      %s69 = sphi 0, %s68
      %s85 = sphi 0, %s69
      %s91 = sphi 0, %s93
      %s94 = sphi 0, %s91
      %s95 = sphi 0, %s94
      %s111 = sphi 0, %s95
      %s115 = sphi 0, %s115
      %s117 = sphi 0, %s115
      %s118 = sphi 0, %s117
      %s132 = sphi 0, %s118
    $region4: #{tpu_custom_call.1} parent=1 // loop_header_branch
      %16 = sbr.rel (%p14) target = $region8
    $region5: #{tpu_custom_call.1} parent=1 // loop_body
      %s18 = ssub.s32 %s13, 1
      %s19 = ssub.s32 %s13, 2
      %s20 = sadd.s32 %s13, 1
      %s22 = sadd.s32 %s21, 1
      %p25 = scmp.eq.s32.totalorder %s13, 1
      %p26 = scmp.ne.s32.totalorder %s21, %s23
      %p27 = scmp.eq.s32.totalorder %s13, 0
      %p28 = por %p26, %p27
      %p29 = scmp.ne.s32.totalorder %s21, %s23
      %p30 = scmp.eq.s32.totalorder %s18, 1
      %p31 = por %p29, %p30
      %p32 = scmp.ne.s32.totalorder %s23, %s24
      %p33 = scmp.eq.s32.totalorder %s18, 0
      %p34 = por %p32, %p33
      %p35 = scmp.ne.s32.totalorder %s23, %s24
      %p36 = scmp.eq.s32.totalorder %s19, 1
      %p37 = por %p35, %p36
      %p39 = scmp.ne.s32.totalorder %s24, %s38
      %p40 = scmp.eq.s32.totalorder %s19, 0
      %p41 = por %p39, %p40
      %s43 = sadd.s32 %s42, 1
      %p46 = scmp.eq.s32.totalorder %s13, 1
      %p47 = scmp.ne.s32.totalorder %s42, %s44
      %p48 = scmp.eq.s32.totalorder %s13, 0
      %p49 = por %p47, %p48
      %p50 = scmp.ne.s32.totalorder %s42, %s44
      %p51 = scmp.eq.s32.totalorder %s18, 1
      %p52 = por %p50, %p51
      %p53 = scmp.ne.s32.totalorder %s44, %s45
      %p54 = scmp.eq.s32.totalorder %s18, 0
      %p55 = por %p53, %p54
      %p56 = scmp.ne.s32.totalorder %s44, %s45
      %p57 = scmp.eq.s32.totalorder %s19, 1
      %p58 = por %p56, %p57
      %p60 = scmp.ne.s32.totalorder %s45, %s59
      %p61 = scmp.eq.s32.totalorder %s19, 0
      %p62 = por %p60, %p61
      %s63 = ssub.s32 %s13, %s20
      %p64 = scmp.eq.s32.totalorder %s63, 0
      %s66 = sadd.s32 %s65, 1
      %s67 = scalar_select %p64, %s65, %s66
      %p70 = pneg %p64
      %p71 = scmp.eq.s32.totalorder %s13, 1
      %p72 = por %p70, %p71
      %p73 = scmp.ne.s32.totalorder %s65, %s68
      %p74 = scmp.eq.s32.totalorder %s13, 0
      %p75 = por %p73, %p74
      %p76 = scmp.ne.s32.totalorder %s65, %s68
      %p77 = scmp.eq.s32.totalorder %s18, 1
      %p78 = por %p76, %p77
      %p79 = scmp.ne.s32.totalorder %s68, %s69
      %p80 = scmp.eq.s32.totalorder %s18, 0
      %p81 = por %p79, %p80
      %p82 = scmp.ne.s32.totalorder %s68, %s69
      %p83 = scmp.eq.s32.totalorder %s19, 1
      %p84 = por %p82, %p83
      %p86 = scmp.ne.s32.totalorder %s69, %s85
      %p87 = scmp.eq.s32.totalorder %s19, 0
      %p88 = por %p86, %p87
      %s89 = ssub.s32 %s13, %s20
      %p90 = scmp.eq.s32.totalorder %s89, 0
      %s92 = sadd.s32 %s91, 1
      %s93 = scalar_select %p90, %s91, %s92
      %p96 = pneg %p90
      %p97 = scmp.eq.s32.totalorder %s13, 1
      %p98 = por %p96, %p97
      %p99 = scmp.ne.s32.totalorder %s91, %s94
      %p100 = scmp.eq.s32.totalorder %s13, 0
      %p101 = por %p99, %p100
      %p102 = scmp.ne.s32.totalorder %s91, %s94
      %p103 = scmp.eq.s32.totalorder %s18, 1
      %p104 = por %p102, %p103
      %p105 = scmp.ne.s32.totalorder %s94, %s95
      %p106 = scmp.eq.s32.totalorder %s18, 0
      %p107 = por %p105, %p106
      %p108 = scmp.ne.s32.totalorder %s94, %s95
      %p109 = scmp.eq.s32.totalorder %s19, 1
      %p110 = por %p108, %p109
      %p112 = scmp.ne.s32.totalorder %s95, %s111
      %p113 = scmp.eq.s32.totalorder %s19, 0
      %p114 = por %p112, %p113
      %s116 = sadd.s32 %s115, 1
      %p119 = scmp.eq.s32.totalorder %s13, 1
      %p120 = scmp.ne.s32.totalorder %s115, %s117
      %p121 = scmp.eq.s32.totalorder %s13, 0
      %p122 = por %p120, %p121
      %p123 = scmp.ne.s32.totalorder %s115, %s117
      %p124 = scmp.eq.s32.totalorder %s18, 1
      %p125 = por %p123, %p124
      %p126 = scmp.ne.s32.totalorder %s117, %s118
      %p127 = scmp.eq.s32.totalorder %s18, 0
      %p128 = por %p126, %p127
      %p129 = scmp.ne.s32.totalorder %s117, %s118
      %p130 = scmp.eq.s32.totalorder %s19, 1
      %p131 = por %p129, %p130
      %p133 = scmp.ne.s32.totalorder %s118, %s132
      %p134 = scmp.eq.s32.totalorder %s19, 0
      %p135 = por %p133, %p134
      %p136 = scmp.le.s32.totalorder 1, %s13
      %p137 = scmp.lt.s32.totalorder %s13, 3
      %p138 = pnand %p136, %p137
      %p139 = pneg %p138
      // Predicated region
      $region9: #{tpu_custom_call.1} parent=5 // pred_check
        _
      $region10: #{tpu_custom_call.1} parent=5 // pred_check_branch
        %141 = sbr.rel (%p138) target = $region12
      $region11: #{tpu_custom_call.1} parent=5 // pred_region
        %s142 = ssub.s32 %s13, 1
        // Predicated region
        $region13: #{tpu_custom_call.1} parent=11 // pred_check
          %p143 = pneg %p34
        $region14: #{tpu_custom_call.1} parent=11 // pred_check_branch
          %145 = sbr.rel (%p143) target = $region16
        $region15: #{tpu_custom_call.1} parent=11 // pred_region
          %s147 = ssub.s32 384, 384
          %148 = vsyncadd [#allocation3], %s147
          %s149 = sshll.u32 [#allocation2], 4
          %s150 = int_to_ptr.vmem [resolvable:$true] %s149
          %155 = dma.hbm_to_vmem [thread:$0]  %s0, 384, %s150, [#allocation3], 64, 64, 4
        $region16: #{tpu_custom_call.1} parent=11 // pred_fallthru
          _
        // Predicated region
        $region17: #{tpu_custom_call.1} parent=11 // pred_check
          %p156 = pneg %p55
        $region18: #{tpu_custom_call.1} parent=11 // pred_check_branch
          %158 = sbr.rel (%p156) target = $region20
        $region19: #{tpu_custom_call.1} parent=11 // pred_region
          %s160 = ssub.s32 128, 128
          %161 = vsyncadd [#allocation6], %s160
          %s162 = sshll.u32 [#allocation5], 4
          %s163 = int_to_ptr.vmem [resolvable:$true] %s162
          %168 = dma.hbm_to_vmem [thread:$0]  %s1, 128, %s163, [#allocation6], 64, 64, 4
        $region20: #{tpu_custom_call.1} parent=11 // pred_fallthru
          _
      $region12: #{tpu_custom_call.1} parent=5 // pred_fallthru
        _
      %p169 = scmp.lt.s32.totalorder %s13, 2
      // Predicated region
      $region21: #{tpu_custom_call.1} parent=5 // pred_check
        %p170 = pneg %p169
      $region22: #{tpu_custom_call.1} parent=5 // pred_check_branch
        %172 = sbr.rel (%p170) target = $region24
      $region23: #{tpu_custom_call.1} parent=5 // pred_region
        // Predicated region
        $region25: #{tpu_custom_call.1} parent=23 // pred_check
          %p173 = pneg %p75
        $region26: #{tpu_custom_call.1} parent=23 // pred_check_branch
          %175 = sbr.rel (%p173) target = $region28
        $region27: #{tpu_custom_call.1} parent=23 // pred_region
          %s176 = sand.u32 %s13, 1
          %s177 = scalar_lea.sflag [#allocation3], %s176
          %s178 = sand.u32 %s65, 1
          %s179 = smul.addr %s178, 256
          %s180 = scalar_lea.vmem [#allocation7], %s179
          %s182 = ssub.s32 4096, 4096
          %183 = vsyncadd %s177, %s182
          %s184 = smul.addr %s13, 64
          %s185 = smul.addr %s184, 64
          %s186 = scalar_lea.hbm %s2, %s185
          %s187 = sshll.u32 %s180, 4
          %s188 = int_to_ptr.vmem [resolvable:$true] %s187
          %193 = dma.hbm_to_vmem [thread:$0]  %s186, 4096, %s188, %s177, 64, 64, 4
        $region28: #{tpu_custom_call.1} parent=23 // pred_fallthru
          _
        // Predicated region
        $region29: #{tpu_custom_call.1} parent=23 // pred_check
          %p194 = pneg %p101
        $region30: #{tpu_custom_call.1} parent=23 // pred_check_branch
          %196 = sbr.rel (%p194) target = $region32
        $region31: #{tpu_custom_call.1} parent=23 // pred_region
          %p197 = scmp.lt.s32.totalorder %s13, 1
          %s198 = scalar_select %p197, %s13, 1
          %s199 = scalar_lea.vmem %s3, %s198
        $region32: #{tpu_custom_call.1} parent=23 // pred_fallthru
          _
      $region24: #{tpu_custom_call.1} parent=5 // pred_fallthru
        _
      %p200 = scmp.le.s32.totalorder 1, %s13
      %p201 = scmp.lt.s32.totalorder %s13, 3
      %p202 = pnand %p200, %p201
      %p203 = pneg %p202
      // Predicated region
      $region33: #{tpu_custom_call.1} parent=5 // pred_check
        _
      $region34: #{tpu_custom_call.1} parent=5 // pred_check_branch
        %205 = sbr.rel (%p202) target = $region36
      $region35: #{tpu_custom_call.1} parent=5 // pred_region
        %s206 = ssub.s32 %s13, 1
        // Predicated region
        $region37: #{tpu_custom_call.1} parent=35 // pred_check
          %p207 = pneg %p34
        $region38: #{tpu_custom_call.1} parent=35 // pred_check_branch
          %209 = sbr.rel (%p207) target = $region40
        $region39: #{tpu_custom_call.1} parent=35 // pred_region
          %210 = dma.done [#allocation3], 384
        $region40: #{tpu_custom_call.1} parent=35 // pred_fallthru
          _
        // Predicated region
        $region41: #{tpu_custom_call.1} parent=35 // pred_check
          %p211 = pneg %p55
        $region42: #{tpu_custom_call.1} parent=35 // pred_check_branch
          %213 = sbr.rel (%p211) target = $region44
        $region43: #{tpu_custom_call.1} parent=35 // pred_region
          %214 = dma.done [#allocation6], 128
        $region44: #{tpu_custom_call.1} parent=35 // pred_fallthru
          _
        %s215 = sand.u32 %s18, 1
        %s216 = scalar_lea.sflag [#allocation3], %s215
        %s217 = sand.u32 %s68, 1
        %s218 = smul.addr %s217, 256
        %s219 = scalar_lea.vmem [#allocation7], %s218
        // Predicated region
        $region45: #{tpu_custom_call.1} parent=35 // pred_check
          %p220 = pneg %p81
        $region46: #{tpu_custom_call.1} parent=35 // pred_check_branch
          %222 = sbr.rel (%p220) target = $region48
        $region47: #{tpu_custom_call.1} parent=35 // pred_region
          %223 = dma.done %s216, 4096
        $region48: #{tpu_custom_call.1} parent=35 // pred_fallthru
          _
        %p224 = pneg %p34
        %p225 = pneg %p31
        %p226 = pneg %p55
        %p227 = pneg %p52
        %s228 = sand.u32 %s18, 1
        %s229 = scalar_lea.sflag [#allocation3], %s228
        %s230 = sand.u32 %s68, 1
        %s231 = smul.addr %s230, 256
        %s232 = scalar_lea.vmem [#allocation7], %s231
        %p233 = pneg %p81
        %p234 = pneg %p78
        %p235 = scmp.lt.s32.totalorder %s18, 1
        %s236 = scalar_select %p235, %s18, 1
        %s237 = scalar_lea.vmem %s3, %s236
        %p238 = pneg %p107
        %p239 = pneg %p104
        %p240 = pneg %p128
        %p241 = pneg %p125
        %p242 = scmp.lt.s32.totalorder %s18, 1
        %s243 = scalar_select %p242, %s18, 1
        %s244 = scalar_lea.vmem %s3, %s243
        %p246 = scmp.eq.s32.totalorder %s18, 0
        // Predicated region
        $region49: #{tpu_custom_call.1} parent=35 // pred_check
          %p247 = pneg %p246
        $region50: #{tpu_custom_call.1} parent=35 // pred_check_branch
          %249 = sbr.rel (%p247) target = $region52
        $region51: #{tpu_custom_call.1} parent=35 // pred_region
          %v250 = vld [vmem:[#allocation5] sm:$0xf]
          %v251 = vld [vmem:[#allocation5 + $0x4] sm:$0xf]
          %252 = vst [vmem:[#allocation8] sm:$0xf] %v250
          %253 = vst [vmem:[#allocation8 + $0x4] sm:$0xf] %v251
        $region52: #{tpu_custom_call.1} parent=35 // pred_fallthru
          _
        %v254 = vld [vmem:[#allocation8] sm:$0xf]
        %v255 = vld [vmem:[#allocation8 + $0x4] sm:$0xf]
        %v256 = vld [vmem:[#allocation2] sm:$0xf]
        %v257 = vld [vmem:[#allocation2 + $0x4] sm:$0xf]
        %v260 = vunpack.c.l.b16 %v256
        %v261 = vunpack.c.l.b16 %v257
        %v262 = vpack.c.b16 %v261, %v260
        %v265 = vunpack.c.l.b16 %v254
        %v266 = vunpack.c.l.b16 %v255
        %v267 = vpack.c.b16 %v266, %v265
        %vm269 = vcmask 130048
        %v271 = vsel %vm269, %v262, 0
        %273 = vmatprep.subr.bf16.mxu0 0
        %274 = vmatpush1.bf16.msra.mxu0 %v267
        %275 = vmatprep.subr.bf16.mxu0 0
        %276 = vmatpush1.bf16.msra.mxu0 0
        %277 = vmatprep.subr.bf16.mxu0 0
        %278 = vmatpush1.bf16.msra.mxu0 0
        %279 = vmatprep.subr.bf16.mxu0 0
        %280 = vmatpush1.bf16.msra.mxu0 0
        %281 = vmatprep.subr.bf16.mxu0 0
        %282 = vmatpush1.bf16.msra.mxu0 0
        %283 = vmatprep.subr.bf16.mxu0 0
        %284 = vmatpush1.bf16.msra.mxu0 0
        %285 = vmatprep.subr.bf16.mxu0 0
        %286 = vmatpush1.bf16.msra.mxu0 0
        %287 = vmatprep.subr.bf16.mxu0 0
        %288 = vmatpush1.bf16.msra.mxu0 0
        %289 = vmatprep.subr.bf16.mxu0 0
        %290 = vmatpush1.bf16.msra.mxu0 0
        %291 = vmatprep.subr.bf16.mxu0 0
        %292 = vmatpush1.bf16.msra.mxu0 0
        %293 = vmatprep.subr.bf16.mxu0 0
        %294 = vmatpush1.bf16.msra.mxu0 0
        %295 = vmatprep.subr.bf16.mxu0 0
        %296 = vmatpush1.bf16.msra.mxu0 0
        %297 = vmatprep.subr.bf16.mxu0 0
        %298 = vmatpush1.bf16.msra.mxu0 0
        %299 = vmatprep.subr.bf16.mxu0 0
        %300 = vmatpush1.bf16.msra.mxu0 0
        %301 = vmatprep.subr.bf16.mxu0 0
        %302 = vmatpush1.bf16.msra.mxu0 0
        %303 = vmatprep.subr.bf16.mxu0 0
        %304 = vmatpush1.bf16.msra.mxu0 0
        %305 = vmatprep.mubr.bf16.mxu0 0
        %306 = vmatmul.mubr.bf16.gmra.mrb[0].mxu0 %v271
        %v307 = vpop.f32.mrb[0].mxu0
        %v308 = vadd.f32 0.0, %v307
        %v309 = vpop.f32.mrb[0].mxu0
        %v310 = vpop.f32.mrb[0].mxu0
        %v311 = vadd.f32 0.0, %v310
        %v312 = vpop.f32.mrb[0].mxu0
        %313 = vdwg.mxu0
        %v314 = vpack.c.bf16 %v311, %v308
        %s315 = scalar_lea.vmem [#allocation2], 8
        %v316 = vld [vmem:[%s315] sm:$0xf]
        %v317 = vld [vmem:[%s315 + $0x4] sm:$0xf]
        %v320 = vunpack.c.l.b16 %v316
        %v321 = vunpack.c.l.b16 %v317
        %v322 = vpack.c.b16 %v321, %v320
        %v324 = vsel %vm269, %v322, 0
        %326 = vmatprep.subr.bf16.mxu0 0
        %327 = vmatpush1.bf16.msra.mxu0 %v267
        %328 = vmatprep.subr.bf16.mxu0 0
        %329 = vmatpush1.bf16.msra.mxu0 0
        %330 = vmatprep.subr.bf16.mxu0 0
        %331 = vmatpush1.bf16.msra.mxu0 0
        %332 = vmatprep.subr.bf16.mxu0 0
        %333 = vmatpush1.bf16.msra.mxu0 0
        %334 = vmatprep.subr.bf16.mxu0 0
        %335 = vmatpush1.bf16.msra.mxu0 0
        %336 = vmatprep.subr.bf16.mxu0 0
        %337 = vmatpush1.bf16.msra.mxu0 0
        %338 = vmatprep.subr.bf16.mxu0 0
        %339 = vmatpush1.bf16.msra.mxu0 0
        %340 = vmatprep.subr.bf16.mxu0 0
        %341 = vmatpush1.bf16.msra.mxu0 0
        %342 = vmatprep.subr.bf16.mxu0 0
        %343 = vmatpush1.bf16.msra.mxu0 0
        %344 = vmatprep.subr.bf16.mxu0 0
        %345 = vmatpush1.bf16.msra.mxu0 0
        %346 = vmatprep.subr.bf16.mxu0 0
        %347 = vmatpush1.bf16.msra.mxu0 0
        %348 = vmatprep.subr.bf16.mxu0 0
        %349 = vmatpush1.bf16.msra.mxu0 0
        %350 = vmatprep.subr.bf16.mxu0 0
        %351 = vmatpush1.bf16.msra.mxu0 0
        %352 = vmatprep.subr.bf16.mxu0 0
        %353 = vmatpush1.bf16.msra.mxu0 0
        %354 = vmatprep.subr.bf16.mxu0 0
        %355 = vmatpush1.bf16.msra.mxu0 0
        %356 = vmatprep.subr.bf16.mxu0 0
        %357 = vmatpush1.bf16.msra.mxu0 0
        %358 = vmatprep.mubr.bf16.mxu0 0
        %359 = vmatmul.mubr.bf16.gmra.mrb[0].mxu0 %v324
        %v360 = vpop.f32.mrb[0].mxu0
        %v361 = vadd.f32 0.0, %v360
        %v362 = vpop.f32.mrb[0].mxu0
        %v363 = vpop.f32.mrb[0].mxu0
        %v364 = vadd.f32 0.0, %v363
        %v365 = vpop.f32.mrb[0].mxu0
        %366 = vdwg.mxu0
        %v367 = vpack.c.bf16 %v364, %v361
        %s368 = scalar_lea.vmem [#allocation2], 16
        %v369 = vld [vmem:[%s368] sm:$0xf]
        %v370 = vld [vmem:[%s368 + $0x4] sm:$0xf]
        %v373 = vunpack.c.l.b16 %v369
        %v374 = vunpack.c.l.b16 %v370
        %v375 = vpack.c.b16 %v374, %v373
        %v377 = vsel %vm269, %v375, 0
        %379 = vmatprep.subr.bf16.mxu0 0
        %380 = vmatpush1.bf16.msra.mxu0 %v267
        %381 = vmatprep.subr.bf16.mxu0 0
        %382 = vmatpush1.bf16.msra.mxu0 0
        %383 = vmatprep.subr.bf16.mxu0 0
        %384 = vmatpush1.bf16.msra.mxu0 0
        %385 = vmatprep.subr.bf16.mxu0 0
        %386 = vmatpush1.bf16.msra.mxu0 0
        %387 = vmatprep.subr.bf16.mxu0 0
        %388 = vmatpush1.bf16.msra.mxu0 0
        %389 = vmatprep.subr.bf16.mxu0 0
        %390 = vmatpush1.bf16.msra.mxu0 0
        %391 = vmatprep.subr.bf16.mxu0 0
        %392 = vmatpush1.bf16.msra.mxu0 0
        %393 = vmatprep.subr.bf16.mxu0 0
        %394 = vmatpush1.bf16.msra.mxu0 0
        %395 = vmatprep.subr.bf16.mxu0 0
        %396 = vmatpush1.bf16.msra.mxu0 0
        %397 = vmatprep.subr.bf16.mxu0 0
        %398 = vmatpush1.bf16.msra.mxu0 0
        %399 = vmatprep.subr.bf16.mxu0 0
        %400 = vmatpush1.bf16.msra.mxu0 0
        %401 = vmatprep.subr.bf16.mxu0 0
        %402 = vmatpush1.bf16.msra.mxu0 0
        %403 = vmatprep.subr.bf16.mxu0 0
        %404 = vmatpush1.bf16.msra.mxu0 0
        %405 = vmatprep.subr.bf16.mxu0 0
        %406 = vmatpush1.bf16.msra.mxu0 0
        %407 = vmatprep.subr.bf16.mxu0 0
        %408 = vmatpush1.bf16.msra.mxu0 0
        %409 = vmatprep.subr.bf16.mxu0 0
        %410 = vmatpush1.bf16.msra.mxu0 0
        %411 = vmatprep.mubr.bf16.mxu0 0
        %412 = vmatmul.mubr.bf16.gmra.mrb[0].mxu0 %v377
        %v413 = vpop.f32.mrb[0].mxu0
        %v414 = vadd.f32 0.0, %v413
        %v415 = vpop.f32.mrb[0].mxu0
        %v416 = vpop.f32.mrb[0].mxu0
        %v417 = vadd.f32 0.0, %v416
        %v418 = vpop.f32.mrb[0].mxu0
        %419 = vdwg.mxu0
        %v420 = vpack.c.bf16 %v417, %v414
        %v421 = vld [vmem:[%s219] sm:$0xf]
        %v422 = vld [vmem:[%s219 + $0x4] sm:$0xf]
        %v423 = vld [vmem:[%s219 + $0x8] sm:$0xf]
        %v424 = vld [vmem:[%s219 + $0xc] sm:$0xf]
        %v425 = vld [vmem:[%s219 + $0x10] sm:$0xf]
        %v426 = vld [vmem:[%s219 + $0x14] sm:$0xf]
        %v427 = vld [vmem:[%s219 + $0x18] sm:$0xf]
        %v428 = vld [vmem:[%s219 + $0x1c] sm:$0xf]
        %v429 = vld [vmem:[%s219 + $0x20] sm:$0xf]
        %v430 = vld [vmem:[%s219 + $0x24] sm:$0xf]
        %v431 = vld [vmem:[%s219 + $0x28] sm:$0xf]
        %v432 = vld [vmem:[%s219 + $0x2c] sm:$0xf]
        %v433 = vld [vmem:[%s219 + $0x30] sm:$0xf]
        %v434 = vld [vmem:[%s219 + $0x34] sm:$0xf]
        %v435 = vld [vmem:[%s219 + $0x38] sm:$0xf]
        %v436 = vld [vmem:[%s219 + $0x3c] sm:$0xf]
        %v437 = vld [vmem:[%s219 + $0x40] sm:$0xf]
        %v438 = vld [vmem:[%s219 + $0x44] sm:$0xf]
        %v439 = vld [vmem:[%s219 + $0x48] sm:$0xf]
        %v440 = vld [vmem:[%s219 + $0x4c] sm:$0xf]
        %v441 = vld [vmem:[%s219 + $0x50] sm:$0xf]
        %v442 = vld [vmem:[%s219 + $0x54] sm:$0xf]
        %v443 = vld [vmem:[%s219 + $0x58] sm:$0xf]
        %v444 = vld [vmem:[%s219 + $0x5c] sm:$0xf]
        %v445 = vld [vmem:[%s219 + $0x60] sm:$0xf]
        %v446 = vld [vmem:[%s219 + $0x64] sm:$0xf]
        %v447 = vld [vmem:[%s219 + $0x68] sm:$0xf]
        %v448 = vld [vmem:[%s219 + $0x6c] sm:$0xf]
        %v449 = vld [vmem:[%s219 + $0x70] sm:$0xf]
        %v450 = vld [vmem:[%s219 + $0x74] sm:$0xf]
        %v451 = vld [vmem:[%s219 + $0x78] sm:$0xf]
        %v452 = vld [vmem:[%s219 + $0x7c] sm:$0xf]
        %v453 = vld [vmem:[%s219 + $0x80] sm:$0xf]
        %v454 = vld [vmem:[%s219 + $0x84] sm:$0xf]
        %v455 = vld [vmem:[%s219 + $0x88] sm:$0xf]
        %v456 = vld [vmem:[%s219 + $0x8c] sm:$0xf]
        %v457 = vld [vmem:[%s219 + $0x90] sm:$0xf]
        %v458 = vld [vmem:[%s219 + $0x94] sm:$0xf]
        %v459 = vld [vmem:[%s219 + $0x98] sm:$0xf]
        %v460 = vld [vmem:[%s219 + $0x9c] sm:$0xf]
        %v461 = vld [vmem:[%s219 + $0xa0] sm:$0xf]
        %v462 = vld [vmem:[%s219 + $0xa4] sm:$0xf]
        %v463 = vld [vmem:[%s219 + $0xa8] sm:$0xf]
        %v464 = vld [vmem:[%s219 + $0xac] sm:$0xf]
        %v465 = vld [vmem:[%s219 + $0xb0] sm:$0xf]
        %v466 = vld [vmem:[%s219 + $0xb4] sm:$0xf]
        %v467 = vld [vmem:[%s219 + $0xb8] sm:$0xf]
        %v468 = vld [vmem:[%s219 + $0xbc] sm:$0xf]
        %v469 = vld [vmem:[%s219 + $0xc0] sm:$0xf]
        %v470 = vld [vmem:[%s219 + $0xc4] sm:$0xf]
        %v471 = vld [vmem:[%s219 + $0xc8] sm:$0xf]
        %v472 = vld [vmem:[%s219 + $0xcc] sm:$0xf]
        %v473 = vld [vmem:[%s219 + $0xd0] sm:$0xf]
        %v474 = vld [vmem:[%s219 + $0xd4] sm:$0xf]
        %v475 = vld [vmem:[%s219 + $0xd8] sm:$0xf]
        %v476 = vld [vmem:[%s219 + $0xdc] sm:$0xf]
        %v477 = vld [vmem:[%s219 + $0xe0] sm:$0xf]
        %v478 = vld [vmem:[%s219 + $0xe4] sm:$0xf]
        %v479 = vld [vmem:[%s219 + $0xe8] sm:$0xf]
        %v480 = vld [vmem:[%s219 + $0xec] sm:$0xf]
        %v481 = vld [vmem:[%s219 + $0xf0] sm:$0xf]
        %v482 = vld [vmem:[%s219 + $0xf4] sm:$0xf]
        %v483 = vld [vmem:[%s219 + $0xf8] sm:$0xf]
        %v484 = vld [vmem:[%s219 + $0xfc] sm:$0xf]
        %v485 = vld [vmem:[%s244] sm:$0x1]
        %v487 = vlaneseq
        %v488 = vshrl.u32 %v487, 7
        %v489 = vsub.s32 0, %v488
        %v490 = vrot.slane %v485, %v489
        %v556 = vunpack.c.l.b16 %v421
        %v557 = vunpack.c.l.b16 %v422
        %v558 = vunpack.c.l.b16 %v423
        %v559 = vunpack.c.l.b16 %v424
        %v560 = vunpack.c.l.b16 %v425
        %v561 = vunpack.c.l.b16 %v426
        %v562 = vunpack.c.l.b16 %v427
        %v563 = vunpack.c.l.b16 %v428
        %v564 = vunpack.c.l.b16 %v429
        %v565 = vunpack.c.l.b16 %v430
        %v566 = vunpack.c.l.b16 %v431
        %v567 = vunpack.c.l.b16 %v432
        %v568 = vunpack.c.l.b16 %v433
        %v569 = vunpack.c.l.b16 %v434
        %v570 = vunpack.c.l.b16 %v435
        %v571 = vunpack.c.l.b16 %v436
        %v572 = vunpack.c.l.b16 %v437
        %v573 = vunpack.c.l.b16 %v438
        %v574 = vunpack.c.l.b16 %v439
        %v575 = vunpack.c.l.b16 %v440
        %v576 = vunpack.c.l.b16 %v441
        %v577 = vunpack.c.l.b16 %v442
        %v578 = vunpack.c.l.b16 %v443
        %v579 = vunpack.c.l.b16 %v444
        %v580 = vunpack.c.l.b16 %v445
        %v581 = vunpack.c.l.b16 %v446
        %v582 = vunpack.c.l.b16 %v447
        %v583 = vunpack.c.l.b16 %v448
        %v584 = vunpack.c.l.b16 %v449
        %v585 = vunpack.c.l.b16 %v450
        %v586 = vunpack.c.l.b16 %v451
        %v587 = vunpack.c.l.b16 %v452
        %v588 = vunpack.c.l.b16 %v453
        %v589 = vunpack.c.l.b16 %v454
        %v590 = vunpack.c.l.b16 %v455
        %v591 = vunpack.c.l.b16 %v456
        %v592 = vunpack.c.l.b16 %v457
        %v593 = vunpack.c.l.b16 %v458
        %v594 = vunpack.c.l.b16 %v459
        %v595 = vunpack.c.l.b16 %v460
        %v596 = vunpack.c.l.b16 %v461
        %v597 = vunpack.c.l.b16 %v462
        %v598 = vunpack.c.l.b16 %v463
        %v599 = vunpack.c.l.b16 %v464
        %v600 = vunpack.c.l.b16 %v465
        %v601 = vunpack.c.l.b16 %v466
        %v602 = vunpack.c.l.b16 %v467
        %v603 = vunpack.c.l.b16 %v468
        %v604 = vunpack.c.l.b16 %v469
        %v605 = vunpack.c.l.b16 %v470
        %v606 = vunpack.c.l.b16 %v471
        %v607 = vunpack.c.l.b16 %v472
        %v608 = vunpack.c.l.b16 %v473
        %v609 = vunpack.c.l.b16 %v474
        %v610 = vunpack.c.l.b16 %v475
        %v611 = vunpack.c.l.b16 %v476
        %v612 = vunpack.c.l.b16 %v477
        %v613 = vunpack.c.l.b16 %v478
        %v614 = vunpack.c.l.b16 %v479
        %v615 = vunpack.c.l.b16 %v480
        %v616 = vunpack.c.l.b16 %v481
        %v617 = vunpack.c.l.b16 %v482
        %v618 = vunpack.c.l.b16 %v483
        %v619 = vunpack.c.l.b16 %v484
        %v620 = vpack.c.b16 %v557, %v556
        %v621 = vpack.c.b16 %v559, %v558
        %v622 = vpack.c.b16 %v561, %v560
        %v623 = vpack.c.b16 %v563, %v562
        %v624 = vpack.c.b16 %v565, %v564
        %v625 = vpack.c.b16 %v567, %v566
        %v626 = vpack.c.b16 %v569, %v568
        %v627 = vpack.c.b16 %v571, %v570
        %v628 = vpack.c.b16 %v573, %v572
        %v629 = vpack.c.b16 %v575, %v574
        %v630 = vpack.c.b16 %v577, %v576
        %v631 = vpack.c.b16 %v579, %v578
        %v632 = vpack.c.b16 %v581, %v580
        %v633 = vpack.c.b16 %v583, %v582
        %v634 = vpack.c.b16 %v585, %v584
        %v635 = vpack.c.b16 %v587, %v586
        %v636 = vpack.c.b16 %v589, %v588
        %v637 = vpack.c.b16 %v591, %v590
        %v638 = vpack.c.b16 %v593, %v592
        %v639 = vpack.c.b16 %v595, %v594
        %v640 = vpack.c.b16 %v597, %v596
        %v641 = vpack.c.b16 %v599, %v598
        %v642 = vpack.c.b16 %v601, %v600
        %v643 = vpack.c.b16 %v603, %v602
        %v644 = vpack.c.b16 %v605, %v604
        %v645 = vpack.c.b16 %v607, %v606
        %v646 = vpack.c.b16 %v609, %v608
        %v647 = vpack.c.b16 %v611, %v610
        %v648 = vpack.c.b16 %v613, %v612
        %v649 = vpack.c.b16 %v615, %v614
        %v650 = vpack.c.b16 %v617, %v616
        %v651 = vpack.c.b16 %v619, %v618
        %684 = vmatprep.subr.bf16.mxu0 0
        %685 = vmatpush1.bf16.msra.mxu0 %v620
        %686 = vmatprep.subr.bf16.mxu0 0
        %687 = vmatpush1.bf16.msra.mxu0 %v621
        %688 = vmatprep.subr.bf16.mxu0 0
        %689 = vmatpush1.bf16.msra.mxu0 %v622
        %690 = vmatprep.subr.bf16.mxu0 0
        %691 = vmatpush1.bf16.msra.mxu0 %v623
        %692 = vmatprep.subr.bf16.mxu0 0
        %693 = vmatpush1.bf16.msra.mxu0 %v624
        %694 = vmatprep.subr.bf16.mxu0 0
        %695 = vmatpush1.bf16.msra.mxu0 %v625
        %696 = vmatprep.subr.bf16.mxu0 0
        %697 = vmatpush1.bf16.msra.mxu0 %v626
        %698 = vmatprep.subr.bf16.mxu0 0
        %699 = vmatpush1.bf16.msra.mxu0 %v627
        %700 = vmatprep.subr.bf16.mxu0 0
        %701 = vmatpush1.bf16.msra.mxu0 %v628
        %702 = vmatprep.subr.bf16.mxu0 0
        %703 = vmatpush1.bf16.msra.mxu0 %v629
        %704 = vmatprep.subr.bf16.mxu0 0
        %705 = vmatpush1.bf16.msra.mxu0 %v630
        %706 = vmatprep.subr.bf16.mxu0 0
        %707 = vmatpush1.bf16.msra.mxu0 %v631
        %708 = vmatprep.subr.bf16.mxu0 0
        %709 = vmatpush1.bf16.msra.mxu0 %v632
        %710 = vmatprep.subr.bf16.mxu0 0
        %711 = vmatpush1.bf16.msra.mxu0 %v633
        %712 = vmatprep.subr.bf16.mxu0 0
        %713 = vmatpush1.bf16.msra.mxu0 %v634
        %714 = vmatprep.subr.bf16.mxu0 0
        %715 = vmatpush1.bf16.msra.mxu0 %v635
        %716 = vmatprep.mubr.bf16.mxu0 %v314
        %717 = vmatmul.mubr.bf16.gmra.mrb[0].mxu0 %v267
        %v718 = vpop.f32.mrb[0].mxu0
        %v719 = vadd.f32 %v490, %v718
        %v720 = vpop.f32.mrb[0].mxu0
        %v721 = vpop.f32.mrb[0].mxu0
        %v722 = vadd.f32 %v490, %v721
        %v723 = vpop.f32.mrb[0].mxu0
        %724 = vdwg.mxu0
        %725 = vmatprep.subr.bf16.mxu0 0
        %726 = vmatpush1.bf16.msra.mxu0 %v636
        %727 = vmatprep.subr.bf16.mxu0 0
        %728 = vmatpush1.bf16.msra.mxu0 %v637
        %729 = vmatprep.subr.bf16.mxu0 0
        %730 = vmatpush1.bf16.msra.mxu0 %v638
        %731 = vmatprep.subr.bf16.mxu0 0
        %732 = vmatpush1.bf16.msra.mxu0 %v639
        %733 = vmatprep.subr.bf16.mxu0 0
        %734 = vmatpush1.bf16.msra.mxu0 %v640
        %735 = vmatprep.subr.bf16.mxu0 0
        %736 = vmatpush1.bf16.msra.mxu0 %v641
        %737 = vmatprep.subr.bf16.mxu0 0
        %738 = vmatpush1.bf16.msra.mxu0 %v642
        %739 = vmatprep.subr.bf16.mxu0 0
        %740 = vmatpush1.bf16.msra.mxu0 %v643
        %741 = vmatprep.subr.bf16.mxu0 0
        %742 = vmatpush1.bf16.msra.mxu0 %v644
        %743 = vmatprep.subr.bf16.mxu0 0
        %744 = vmatpush1.bf16.msra.mxu0 %v645
        %745 = vmatprep.subr.bf16.mxu0 0
        %746 = vmatpush1.bf16.msra.mxu0 %v646
        %747 = vmatprep.subr.bf16.mxu0 0
        %748 = vmatpush1.bf16.msra.mxu0 %v647
        %749 = vmatprep.subr.bf16.mxu0 0
        %750 = vmatpush1.bf16.msra.mxu0 %v648
        %751 = vmatprep.subr.bf16.mxu0 0
        %752 = vmatpush1.bf16.msra.mxu0 %v649
        %753 = vmatprep.subr.bf16.mxu0 0
        %754 = vmatpush1.bf16.msra.mxu0 %v650
        %755 = vmatprep.subr.bf16.mxu0 0
        %756 = vmatpush1.bf16.msra.mxu0 %v651
        %757 = vmatprep.mubr.bf16.mxu0 %v420
        %758 = vmatmul.mubr.bf16.gmra.mrb[0].mxu0 %v367
        %v759 = vpop.f32.mrb[0].mxu0
        %v760 = vadd.f32 %v719, %v759
        %v761 = vpop.f32.mrb[0].mxu0
        %v762 = vpop.f32.mrb[0].mxu0
        %v763 = vadd.f32 %v722, %v762
        %v764 = vpop.f32.mrb[0].mxu0
        %765 = vdwg.mxu0
        %v766 = vmax.f32 %v760, 0.0
        %v767 = vmax.f32 %v763, 0.0
        %v768 = vpack.c.bf16 %v767, %v766
        %v770 = vunpack.c.l.b16 %v768
        %v771 = vunpack.c.h.b16 %v768
        %v772 = vpack.c.b16 %v770, %v770
        %v773 = vpack.c.b16 %v771, %v771
        %776 = vst [vmem:[#allocation8] sm:$0xf] %v772
        %777 = vst [vmem:[#allocation8 + $0x4] sm:$0xf] %v773
        // Predicated region
        $region53: #{tpu_custom_call.1} parent=35 // pred_check
          %p778 = pneg %p125
        $region54: #{tpu_custom_call.1} parent=35 // pred_check_branch
          %780 = sbr.rel (%p778) target = $region56
        $region55: #{tpu_custom_call.1} parent=35 // pred_region
          %s782 = ssub.s32 128, 128
          %783 = vsyncadd [#allocation4], %s782
          %s784 = sshll.u32 [#allocation8], 4
          %s785 = int_to_ptr.vmem [resolvable:$true] %s784
          %790 = dma.vmem_to_hbm [thread:$0]  %s785, 128, %s4, [#allocation4], 64, 64, 4
        $region56: #{tpu_custom_call.1} parent=35 // pred_fallthru
          _
        // Predicated region
        $region57: #{tpu_custom_call.1} parent=35 // pred_check
          %p791 = pneg %p125
        $region58: #{tpu_custom_call.1} parent=35 // pred_check_branch
          %793 = sbr.rel (%p791) target = $region60
        $region59: #{tpu_custom_call.1} parent=35 // pred_region
          %794 = dma.done [#allocation4], 128
        $region60: #{tpu_custom_call.1} parent=35 // pred_fallthru
          _
      $region36: #{tpu_custom_call.1} parent=5 // pred_fallthru
        _
      %p795 = scmp.le.s32.totalorder 2, %s13
      // Predicated region
      $region61: #{tpu_custom_call.1} parent=5 // pred_check
        %p796 = pneg %p795
      $region62: #{tpu_custom_call.1} parent=5 // pred_check_branch
        %798 = sbr.rel (%p796) target = $region64
      $region63: #{tpu_custom_call.1} parent=5 // pred_region
        %s799 = ssub.s32 %s13, 2
      $region64: #{tpu_custom_call.1} parent=5 // pred_fallthru
        _
    $region6: #{tpu_custom_call.1} parent=1 // loop_footer
      %s17 = sadd.s32 1, %s13
    $region7: #{tpu_custom_call.1} parent=1 // loop_footer_branch
      %12 = sbr.rel target = $region3
    $region8: #{tpu_custom_call.1} parent=1 // loop_exit
      _
    %800 = vsyncpa [#allocation3], 1
    %s801 = scalar_lea.sflag [#allocation3], 1
    %802 = vsyncpa %s801, 1
    %803 = vsyncpa [#allocation6], 1
    %804 = vsyncpa [#allocation4], 1
    %s805 = scalar_lea.sflag [#allocation4], 1
    %806 = vsyncpa %s805, 1

</llo_original>
